<compile_context>
chip_gen: v7x
topology: tpu7x:2x2x1
jax: 0.10.0
libtpu: 0.0.40
codegen_flags: <defaults>
</compile_context>

<pallas_src>
from functools import partial

import numpy as np
import jax
import jax.numpy as jnp
from jax.experimental import pallas as pl
from jax.experimental.pallas import tpu as pltpu  # noqa: F401  (TPU backend)


# ----------------------------- Pallas kernel -------------------------------

def _make_fused_resize_kernel(C: int, H: int):
    """Kernel computing out[c] = Wh @ img[c] @ Ww^T for all channels at once.

    The crop window is already folded into Wh / Ww^T (zero weight outside the
    crop), so the kernel reads the full image and never sees the crop shape.
    """

    def kernel(wh_ref, wwt_ref, img_ref, o_ref):
        wh = wh_ref[...]                                    # (oh, H)   bf16
        wwt = wwt_ref[...]                                  # (W,  ow)  bf16
        img = img_ref[...].astype(jnp.bfloat16)             # (C*H, W)  bf16
        # Channel-fused width contraction: one (C*H, W) @ (W, ow) MXU matmul.
        tmp = jnp.dot(img, wwt, preferred_element_type=jnp.float32)  # (C*H, ow)
        tmp = tmp.astype(jnp.bfloat16)
        # Height contraction, statically unrolled over the tiny channel dim.
        for c in range(C):
            o_ref[c] = jnp.dot(wh, tmp[c * H:(c + 1) * H, :],
                               preferred_element_type=jnp.float32)

    return kernel


# ------------------------------- JAX glue ----------------------------------

def _crop_resize_weights(full_size: int, out_size: int, offset, crop_size,
                         antialias: bool):
    """(out_size, full_size) separable triangle-filter weights that fuse the
    crop window [offset, offset+crop_size) with the resize to out_size.

    Matches torchvision's antialiased bilinear resize of the cropped region;
    for upsampling it reduces to standard align_corners=False bilinear.
    Shapes are static; only the *values* depend on the crop parameters.
    """
    offset = offset.astype(jnp.float32)
    crop_size = crop_size.astype(jnp.float32)
    scale = crop_size / jnp.float32(out_size)
    filterscale = jnp.maximum(scale, 1.0) if antialias else jnp.float32(1.0)
    i = jax.lax.broadcasted_iota(jnp.float32, (out_size, full_size), 0)
    j = jax.lax.broadcasted_iota(jnp.float32, (out_size, full_size), 1)
    center = offset + (i + 0.5) * scale
    w = jnp.maximum(1.0 - jnp.abs((j + 0.5 - center) / filterscale), 0.0)
    in_window = (j >= offset) & (j < offset + crop_size)
    w = jnp.where(in_window, w, 0.0)
    w = w / jnp.maximum(jnp.sum(w, axis=1, keepdims=True), 1e-8)
    return w


@partial(jax.jit, static_argnames=("out_size", "antialias"))
def _resized_crop_with_bboxes(image, bboxes, top, left, height, width, *,
                              out_size, antialias=True):
    C, H, W = image.shape
    oh, ow = out_size

    # Crop fused into resize weights -> static shapes -> no recompiles.
    wh = _crop_resize_weights(H, oh, top, height, antialias)       # (oh, H)
    ww = _crop_resize_weights(W, ow, left, width, antialias)       # (ow, W)

    img2d = image.reshape(C * H, W)   # contiguous CHW -> layout no-op

    new_image = pl.pallas_call(
        _make_fused_resize_kernel(C, H),
        out_shape=jax.ShapeDtypeStruct((C, oh, ow), jnp.float32),
    )(wh.astype(jnp.bfloat16), ww.T.astype(jnp.bfloat16), img2d)

    # --- bbox crop/clamp/rescale: plain jnp (XLA fuses it) ------------------
    dt = bboxes.dtype
    offset = jnp.stack([left, top, left, top]).astype(dt)
    maxes = jnp.stack([width, height, width, height]).astype(dt)
    # NOTE: matches the reference forward exactly -- resize_bboxes is called
    # with the *original* image size (current_size), not the crop size.
    scales = jnp.asarray([ow / W, oh / H, ow / W, oh / H], dtype=dt)
    new_bboxes = jnp.clip(bboxes - offset, 0.0, maxes) * scales
    return new_image, new_bboxes


class RandomResizedCrop:
    """JAX/Pallas port of RandomResizedCrop forward (bilinear, antialias=True)."""

    def __init__(self, size, scale=(0.08, 1.0), ratio=(3.0 / 4.0, 4.0 / 3.0),
                 antialias=True, seed=0):
        if isinstance(size, int):
            size = (size, size)
        self.size = tuple(size)
        self.scale = scale
        self.ratio = ratio
        self.antialias = antialias
        self._rng = np.random.default_rng(seed)

    def _get_params(self, h, w):
        # Mirrors torchvision RandomResizedCrop.get_params (host-side RNG glue).
        area = h * w
        log_ratio = np.log(np.asarray(self.ratio, dtype=np.float64))
        for _ in range(10):
            target_area = area * self._rng.uniform(self.scale[0], self.scale[1])
            aspect = float(np.exp(self._rng.uniform(log_ratio[0], log_ratio[1])))
            cw = int(round(np.sqrt(target_area * aspect)))
            ch = int(round(np.sqrt(target_area / aspect)))
            if 0 < cw <= w and 0 < ch <= h:
                top = int(self._rng.integers(0, h - ch + 1))
                left = int(self._rng.integers(0, w - cw + 1))
                return top, left, ch, cw
        # Fallback: center crop.
        in_ratio = w / h
        if in_ratio < self.ratio[0]:
            cw = w
            ch = int(round(cw / self.ratio[0]))
        elif in_ratio > self.ratio[1]:
            ch = h
            cw = int(round(ch * self.ratio[1]))
        else:
            cw, ch = w, h
        top = (h - ch) // 2
        left = (w - cw) // 2
        return top, left, ch, cw

    def __call__(self, image, bboxes):
        H, W = int(image.shape[-2]), int(image.shape[-1])
        top, left, height, width = self._get_params(H, W)
        # Crop params are passed as traced scalar values: different random
        # crops reuse the same compiled executable (no retrace / recompile).
        return _resized_crop_with_bboxes(
            image, bboxes,
            jnp.int32(top), jnp.int32(left), jnp.int32(height), jnp.int32(width),
            out_size=self.size, antialias=self.antialias)


# --------------------------------- main -------------------------------------

if __name__ == "__main__":
    key = jax.random.PRNGKey(0)
    k_img, k_box = jax.random.split(key)

    # image: (3, 16, 16) float32 in [0, 1); bboxes: (8, 4) xyxy in pixel coords
    image = jax.random.uniform(k_img, (3, 16, 16), dtype=jnp.float32)
    bboxes = jax.random.uniform(k_box, (8, 4), dtype=jnp.float32) * 16.0

    transform = RandomResizedCrop(size=8, seed=0)
    new_image, new_bboxes = transform(image, bboxes)
    jax.block_until_ready((new_image, new_bboxes))
    assert new_image.shape == (3, 8, 8) and new_image.dtype == jnp.float32
    assert new_bboxes.shape == (8, 4) and new_bboxes.dtype == jnp.float32
    assert bool(jnp.all(jnp.isfinite(new_image)))
    assert bool(jnp.all(jnp.isfinite(new_bboxes)))

    # A second call with a different random crop reuses the same executable.
    new_image2, new_bboxes2 = transform(image, bboxes)
    jax.block_until_ready((new_image2, new_bboxes2))
    assert new_image2.shape == (3, 8, 8) and new_bboxes2.shape == (8, 4)

    print("KERNEL_OK")
</pallas_src>

<mosaic_0001>
module attributes {stable_mosaic.version = 11 : i64} {
  func.func @kernel(%arg0: memref<8x16xbf16, #tpu.memory_space<vmem>>, %arg1: memref<16x8xbf16, #tpu.memory_space<vmem>>, %arg2: memref<48x16xf32, #tpu.memory_space<vmem>>, %arg3: memref<3x8x8xf32, #tpu.memory_space<vmem>>) attributes {dimension_semantics = [], scalar_prefetch = 0 : i64, scratch_operands = 0 : i64, tpu.core_type = #tpu.core_type<tc>} {
    %c0 = arith.constant 0 : index
    %c0_0 = arith.constant 0 : index
    %0 = vector.load %arg0[%c0, %c0_0] : memref<8x16xbf16, #tpu.memory_space<vmem>>, vector<8x16xbf16>
    %c0_1 = arith.constant 0 : index
    %c0_2 = arith.constant 0 : index
    %1 = vector.load %arg1[%c0_1, %c0_2] : memref<16x8xbf16, #tpu.memory_space<vmem>>, vector<16x8xbf16>
    %c0_3 = arith.constant 0 : index
    %c0_4 = arith.constant 0 : index
    %2 = vector.load %arg2[%c0_3, %c0_4] : memref<48x16xf32, #tpu.memory_space<vmem>>, vector<48x16xf32>
    %3 = arith.truncf %2 : vector<48x16xf32> to vector<48x16xbf16>
    %cst = arith.constant dense<0.000000e+00> : vector<48x8xf32>
    %4 = tpu.matmul %3, %1, %cst {dimension_numbers = #tpu.dot_dimension_numbers<[1], [0], [0], [1], [0, 0, 1, 1], [], []>} : vector<48x16xbf16>, vector<16x8xbf16>, vector<48x8xf32> -> vector<48x8xf32>
    %5 = arith.truncf %4 : vector<48x8xf32> to vector<48x8xbf16>
    %6 = vector.extract_strided_slice %5 {offsets = [0, 0], sizes = [16, 8], strides = [1, 1]} : vector<48x8xbf16> to vector<16x8xbf16>
    %cst_5 = arith.constant dense<0.000000e+00> : vector<8x8xf32>
    %7 = tpu.matmul %0, %6, %cst_5 {dimension_numbers = #tpu.dot_dimension_numbers<[1], [0], [0], [1], [0, 0, 1, 1], [], []>} : vector<8x16xbf16>, vector<16x8xbf16>, vector<8x8xf32> -> vector<8x8xf32>
    %c0_6 = arith.constant 0 : index
    %c0_7 = arith.constant 0 : index
    %c0_8 = arith.constant 0 : index
    %8 = vector.load %arg3[%c0_6, %c0_7, %c0_8] : memref<3x8x8xf32, #tpu.memory_space<vmem>>, vector<1x8x8xf32>
    %9 = vector.shape_cast %8 : vector<1x8x8xf32> to vector<8x8xf32>
    %10 = vector.shape_cast %7 : vector<8x8xf32> to vector<1x8x8xf32>
    tpu.vector_store %arg3[%c0_6, %c0_7, %c0_8], %10 {strides = array<i32>} : memref<3x8x8xf32, #tpu.memory_space<vmem>>, vector<1x8x8xf32>,
    %11 = vector.extract_strided_slice %5 {offsets = [16, 0], sizes = [16, 8], strides = [1, 1]} : vector<48x8xbf16> to vector<16x8xbf16>
    %cst_9 = arith.constant dense<0.000000e+00> : vector<8x8xf32>
    %12 = tpu.matmul %0, %11, %cst_9 {dimension_numbers = #tpu.dot_dimension_numbers<[1], [0], [0], [1], [0, 0, 1, 1], [], []>} : vector<8x16xbf16>, vector<16x8xbf16>, vector<8x8xf32> -> vector<8x8xf32>
    %c1 = arith.constant 1 : index
    %c0_10 = arith.constant 0 : index
    %c0_11 = arith.constant 0 : index
    %13 = vector.load %arg3[%c1, %c0_10, %c0_11] : memref<3x8x8xf32, #tpu.memory_space<vmem>>, vector<1x8x8xf32>
    %14 = vector.shape_cast %13 : vector<1x8x8xf32> to vector<8x8xf32>
    %15 = vector.shape_cast %12 : vector<8x8xf32> to vector<1x8x8xf32>
    tpu.vector_store %arg3[%c1, %c0_10, %c0_11], %15 {strides = array<i32>} : memref<3x8x8xf32, #tpu.memory_space<vmem>>, vector<1x8x8xf32>,
    %16 = vector.extract_strided_slice %5 {offsets = [32, 0], sizes = [16, 8], strides = [1, 1]} : vector<48x8xbf16> to vector<16x8xbf16>
    %cst_12 = arith.constant dense<0.000000e+00> : vector<8x8xf32>
    %17 = tpu.matmul %0, %16, %cst_12 {dimension_numbers = #tpu.dot_dimension_numbers<[1], [0], [0], [1], [0, 0, 1, 1], [], []>} : vector<8x16xbf16>, vector<16x8xbf16>, vector<8x8xf32> -> vector<8x8xf32>
    %c2 = arith.constant 2 : index
    %c0_13 = arith.constant 0 : index
    %c0_14 = arith.constant 0 : index
    %18 = vector.load %arg3[%c2, %c0_13, %c0_14] : memref<3x8x8xf32, #tpu.memory_space<vmem>>, vector<1x8x8xf32>
    %19 = vector.shape_cast %18 : vector<1x8x8xf32> to vector<8x8xf32>
    %20 = vector.shape_cast %17 : vector<8x8xf32> to vector<1x8x8xf32>
    tpu.vector_store %arg3[%c2, %c0_13, %c0_14], %20 {strides = array<i32>} : memref<3x8x8xf32, #tpu.memory_space<vmem>>, vector<1x8x8xf32>,
    return
  }
}

</mosaic_0001>

<llo_original>
// kernel: _resized_crop_with_bboxes.1
$region0: #{_resized_crop_with_bboxes.1}
  #allocation0 [shape = 'u32[]', space=smem, size = 0x4, offset = 0x4, fixed_abs, tag = 'smem constant byte address 0x4 - core index']
  #allocation1 [shape = 'u32[144,128]{1,0:T(1,128)}', space=vmem, size = 0x12000, scoped, tag = 'internal scratch']
  %s0 = inlined_call_operand.vmem [shape: bf16[8,16], index: 0, kind: input, shape index: {}]
  %s1 = inlined_call_operand.vmem [shape: bf16[16,8], index: 1, kind: input, shape index: {}]
  %s2 = inlined_call_operand.vmem [shape: f32[48,16], index: 2, kind: input, shape index: {}]
  %s3 = inlined_call_operand.hbm [shape: f32[3,8,8], index: 3, kind: output, shape index: {}]
  %s4 = sld [smem:[#allocation0]]
  $region22: #{_resized_crop_with_bboxes.1} parent=0
    _
  %s6 = ssub.s32 1, %s4
  %s7 = scalar_select 0, %s6, %s4
  $region1: #{_resized_crop_with_bboxes.1} parent=0
    #allocation2 [shape = 'u8[12288]{0}', space=vmem, size = 0x3000, scoped, tag = 'output window, operand 0, single buffered']
    #allocation3 [shape = 's32[1]{0}', space=sflag, size = 0x4, scoped, tag = 'scoped memory for _resized_crop_with_bboxes.1']
    %8 = vsyncpa [#allocation3], 0
    // Predicated region
    $region2: #{_resized_crop_with_bboxes.1} parent=1 // pred_check
      _
    $region3: #{_resized_crop_with_bboxes.1} parent=1 // pred_check_branch
      %10 = sbr.rel (0) target = $region5
    $region4: #{_resized_crop_with_bboxes.1} parent=1 // pred_region
      _
    $region5: #{_resized_crop_with_bboxes.1} parent=1 // pred_fallthru
      _
    // Predicated region
    $region6: #{_resized_crop_with_bboxes.1} parent=1 // pred_check
      _
    $region7: #{_resized_crop_with_bboxes.1} parent=1 // pred_check_branch
      %12 = sbr.rel (0) target = $region9
    $region8: #{_resized_crop_with_bboxes.1} parent=1 // pred_region
      _
    $region9: #{_resized_crop_with_bboxes.1} parent=1 // pred_fallthru
      _
    // Predicated region
    $region10: #{_resized_crop_with_bboxes.1} parent=1 // pred_check
      _
    $region11: #{_resized_crop_with_bboxes.1} parent=1 // pred_check_branch
      %14 = sbr.rel (0) target = $region13
    $region12: #{_resized_crop_with_bboxes.1} parent=1 // pred_region
      _
    $region13: #{_resized_crop_with_bboxes.1} parent=1 // pred_fallthru
      _
    %v16 = vld [vmem:[%s0] sm:$0xf]
    %v17 = vld [vmem:[%s1] sm:$0xf]
    %v18 = vld [vmem:[%s1 + $0x4] sm:$0xf]
    %v19 = vld [vmem:[%s2] sm:$0xff]
    %v20 = vld [vmem:[%s2 + $0x8] sm:$0xff]
    %v21 = vld [vmem:[%s2 + $0x10] sm:$0xff]
    %v22 = vld [vmem:[%s2 + $0x18] sm:$0xff]
    %v23 = vld [vmem:[%s2 + $0x20] sm:$0xff]
    %v24 = vld [vmem:[%s2 + $0x28] sm:$0xff]
    %v25 = vpack.c.bf16 %v20, %v19
    %v26 = vpack.c.bf16 %v22, %v21
    %v27 = vpack.c.bf16 %v24, %v23
    %v30 = vunpack.c.l.b16 %v17
    %v31 = vunpack.c.l.b16 %v18
    %v32 = vpack.c.b16 %v31, %v30
    %vm34 = vcmask 130048
    %v36 = vsel %vm34, %v25, 0
    %v39 = vsel %vm34, %v26, 0
    %v42 = vsel %vm34, %v27, 0
    %44 = vmatprep.subr.bf16.mxu0 0
    %45 = vmatpush1.bf16.msra.mxu0 %v32
    %46 = vmatprep.subr.bf16.mxu0 0
    %47 = vmatpush1.bf16.msra.mxu0 0
    %48 = vmatprep.subr.bf16.mxu0 0
    %49 = vmatpush1.bf16.msra.mxu0 0
    %50 = vmatprep.subr.bf16.mxu0 0
    %51 = vmatpush1.bf16.msra.mxu0 0
    %52 = vmatprep.subr.bf16.mxu0 0
    %53 = vmatpush1.bf16.msra.mxu0 0
    %54 = vmatprep.subr.bf16.mxu0 0
    %55 = vmatpush1.bf16.msra.mxu0 0
    %56 = vmatprep.subr.bf16.mxu0 0
    %57 = vmatpush1.bf16.msra.mxu0 0
    %58 = vmatprep.subr.bf16.mxu0 0
    %59 = vmatpush1.bf16.msra.mxu0 0
    %60 = vmatprep.subr.bf16.mxu0 0
    %61 = vmatpush1.bf16.msra.mxu0 0
    %62 = vmatprep.subr.bf16.mxu0 0
    %63 = vmatpush1.bf16.msra.mxu0 0
    %64 = vmatprep.subr.bf16.mxu0 0
    %65 = vmatpush1.bf16.msra.mxu0 0
    %66 = vmatprep.subr.bf16.mxu0 0
    %67 = vmatpush1.bf16.msra.mxu0 0
    %68 = vmatprep.subr.bf16.mxu0 0
    %69 = vmatpush1.bf16.msra.mxu0 0
    %70 = vmatprep.subr.bf16.mxu0 0
    %71 = vmatpush1.bf16.msra.mxu0 0
    %72 = vmatprep.subr.bf16.mxu0 0
    %73 = vmatpush1.bf16.msra.mxu0 0
    %74 = vmatprep.subr.bf16.mxu0 0
    %75 = vmatpush1.bf16.msra.mxu0 0
    %76 = vmatprep.mubr.bf16.mxu0 0
    %77 = vmatmul.mubr.bf16.gmra.mrb[0].mxu0 %v36
    %v78 = vpop.f32.mrb[0].mxu0
    %v79 = vadd.f32 0.0, %v78
    %v80 = vpop.f32.mrb[0].mxu0
    %v81 = vpop.f32.mrb[0].mxu0
    %v82 = vadd.f32 0.0, %v81
    %v83 = vpop.f32.mrb[0].mxu0
    %84 = vmatprep.mubr.bf16.mxu0 0
    %85 = vmatmul.mubr.bf16.gmra.mrb[0].mxu0 %v39
    %v86 = vpop.f32.mrb[0].mxu0
    %v87 = vadd.f32 0.0, %v86
    %v88 = vpop.f32.mrb[0].mxu0
    %v89 = vpop.f32.mrb[0].mxu0
    %v90 = vadd.f32 0.0, %v89
    %v91 = vpop.f32.mrb[0].mxu0
    %92 = vmatprep.mubr.bf16.mxu0 0
    %93 = vmatmul.mubr.bf16.gmra.mrb[0].mxu0 %v42
    %v94 = vpop.f32.mrb[0].mxu0
    %v95 = vadd.f32 0.0, %v94
    %v96 = vpop.f32.mrb[0].mxu0
    %v97 = vpop.f32.mrb[0].mxu0
    %v98 = vadd.f32 0.0, %v97
    %v99 = vpop.f32.mrb[0].mxu0
    %100 = vdwg.mxu0
    %v101 = vpack.c.bf16 %v82, %v79
    %v102 = vpack.c.bf16 %v90, %v87
    %v103 = vpack.c.bf16 %v98, %v95
    %v105 = vsel %vm34, %v16, 0
    %107 = vmatprep.subr.bf16.mxu0 0
    %108 = vmatpush1.bf16.msra.mxu0 %v101
    %109 = vmatprep.subr.bf16.mxu0 0
    %110 = vmatpush1.bf16.msra.mxu0 0
    %111 = vmatprep.subr.bf16.mxu0 0
    %112 = vmatpush1.bf16.msra.mxu0 0
    %113 = vmatprep.subr.bf16.mxu0 0
    %114 = vmatpush1.bf16.msra.mxu0 0
    %115 = vmatprep.subr.bf16.mxu0 0
    %116 = vmatpush1.bf16.msra.mxu0 0
    %117 = vmatprep.subr.bf16.mxu0 0
    %118 = vmatpush1.bf16.msra.mxu0 0
    %119 = vmatprep.subr.bf16.mxu0 0
    %120 = vmatpush1.bf16.msra.mxu0 0
    %121 = vmatprep.subr.bf16.mxu0 0
    %122 = vmatpush1.bf16.msra.mxu0 0
    %123 = vmatprep.subr.bf16.mxu0 0
    %124 = vmatpush1.bf16.msra.mxu0 0
    %125 = vmatprep.subr.bf16.mxu0 0
    %126 = vmatpush1.bf16.msra.mxu0 0
    %127 = vmatprep.subr.bf16.mxu0 0
    %128 = vmatpush1.bf16.msra.mxu0 0
    %129 = vmatprep.subr.bf16.mxu0 0
    %130 = vmatpush1.bf16.msra.mxu0 0
    %131 = vmatprep.subr.bf16.mxu0 0
    %132 = vmatpush1.bf16.msra.mxu0 0
    %133 = vmatprep.subr.bf16.mxu0 0
    %134 = vmatpush1.bf16.msra.mxu0 0
    %135 = vmatprep.subr.bf16.mxu0 0
    %136 = vmatpush1.bf16.msra.mxu0 0
    %137 = vmatprep.subr.bf16.mxu0 0
    %138 = vmatpush1.bf16.msra.mxu0 0
    %139 = vmatprep.mubr.bf16.mxu0 0
    %140 = vmatmul.mubr.bf16.gmra.mrb[0].mxu0 %v105
    %v141 = vpop.f32.mrb[0].mxu0
    %v142 = vadd.f32 0.0, %v141
    %v143 = vpop.f32.mrb[0].mxu0
    %v144 = vpop.f32.mrb[0].mxu0
    %v145 = vpop.f32.mrb[0].mxu0
    %146 = vdwg.mxu0
    %vm147 = vcmask 64512
    %148 = vst.msk [vmem:[#allocation2] sm:$0xff] %vm147, %v142
    %149 = vmatprep.subr.bf16.mxu0 0
    %150 = vmatpush1.bf16.msra.mxu0 %v102
    %151 = vmatprep.subr.bf16.mxu0 0
    %152 = vmatpush1.bf16.msra.mxu0 0
    %153 = vmatprep.subr.bf16.mxu0 0
    %154 = vmatpush1.bf16.msra.mxu0 0
    %155 = vmatprep.subr.bf16.mxu0 0
    %156 = vmatpush1.bf16.msra.mxu0 0
    %157 = vmatprep.subr.bf16.mxu0 0
    %158 = vmatpush1.bf16.msra.mxu0 0
    %159 = vmatprep.subr.bf16.mxu0 0
    %160 = vmatpush1.bf16.msra.mxu0 0
    %161 = vmatprep.subr.bf16.mxu0 0
    %162 = vmatpush1.bf16.msra.mxu0 0
    %163 = vmatprep.subr.bf16.mxu0 0
    %164 = vmatpush1.bf16.msra.mxu0 0
    %165 = vmatprep.subr.bf16.mxu0 0
    %166 = vmatpush1.bf16.msra.mxu0 0
    %167 = vmatprep.subr.bf16.mxu0 0
    %168 = vmatpush1.bf16.msra.mxu0 0
    %169 = vmatprep.subr.bf16.mxu0 0
    %170 = vmatpush1.bf16.msra.mxu0 0
    %171 = vmatprep.subr.bf16.mxu0 0
    %172 = vmatpush1.bf16.msra.mxu0 0
    %173 = vmatprep.subr.bf16.mxu0 0
    %174 = vmatpush1.bf16.msra.mxu0 0
    %175 = vmatprep.subr.bf16.mxu0 0
    %176 = vmatpush1.bf16.msra.mxu0 0
    %177 = vmatprep.subr.bf16.mxu0 0
    %178 = vmatpush1.bf16.msra.mxu0 0
    %179 = vmatprep.subr.bf16.mxu0 0
    %180 = vmatpush1.bf16.msra.mxu0 0
    %181 = vmatprep.mubr.bf16.mxu0 0
    %182 = vmatmul.mubr.bf16.gmra.mrb[0].mxu0 %v105
    %v183 = vpop.f32.mrb[0].mxu0
    %v184 = vadd.f32 0.0, %v183
    %v185 = vpop.f32.mrb[0].mxu0
    %v186 = vpop.f32.mrb[0].mxu0
    %v187 = vpop.f32.mrb[0].mxu0
    %188 = vdwg.mxu0
    %s189 = scalar_lea.vmem [#allocation2], 8
    %190 = vst.msk [vmem:[%s189] sm:$0xff] %vm147, %v184
    %191 = vmatprep.subr.bf16.mxu0 0
    %192 = vmatpush1.bf16.msra.mxu0 %v103
    %193 = vmatprep.subr.bf16.mxu0 0
    %194 = vmatpush1.bf16.msra.mxu0 0
    %195 = vmatprep.subr.bf16.mxu0 0
    %196 = vmatpush1.bf16.msra.mxu0 0
    %197 = vmatprep.subr.bf16.mxu0 0
    %198 = vmatpush1.bf16.msra.mxu0 0
    %199 = vmatprep.subr.bf16.mxu0 0
    %200 = vmatpush1.bf16.msra.mxu0 0
    %201 = vmatprep.subr.bf16.mxu0 0
    %202 = vmatpush1.bf16.msra.mxu0 0
    %203 = vmatprep.subr.bf16.mxu0 0
    %204 = vmatpush1.bf16.msra.mxu0 0
    %205 = vmatprep.subr.bf16.mxu0 0
    %206 = vmatpush1.bf16.msra.mxu0 0
    %207 = vmatprep.subr.bf16.mxu0 0
    %208 = vmatpush1.bf16.msra.mxu0 0
    %209 = vmatprep.subr.bf16.mxu0 0
    %210 = vmatpush1.bf16.msra.mxu0 0
    %211 = vmatprep.subr.bf16.mxu0 0
    %212 = vmatpush1.bf16.msra.mxu0 0
    %213 = vmatprep.subr.bf16.mxu0 0
    %214 = vmatpush1.bf16.msra.mxu0 0
    %215 = vmatprep.subr.bf16.mxu0 0
    %216 = vmatpush1.bf16.msra.mxu0 0
    %217 = vmatprep.subr.bf16.mxu0 0
    %218 = vmatpush1.bf16.msra.mxu0 0
    %219 = vmatprep.subr.bf16.mxu0 0
    %220 = vmatpush1.bf16.msra.mxu0 0
    %221 = vmatprep.subr.bf16.mxu0 0
    %222 = vmatpush1.bf16.msra.mxu0 0
    %223 = vmatprep.mubr.bf16.mxu0 0
    %224 = vmatmul.mubr.bf16.gmra.mrb[0].mxu0 %v105
    %v225 = vpop.f32.mrb[0].mxu0
    %v226 = vadd.f32 0.0, %v225
    %v227 = vpop.f32.mrb[0].mxu0
    %v228 = vpop.f32.mrb[0].mxu0
    %v229 = vpop.f32.mrb[0].mxu0
    %230 = vdwg.mxu0
    %s231 = scalar_lea.vmem [#allocation2], 16
    %232 = vst.msk [vmem:[%s231] sm:$0xff] %vm147, %v226
    // Predicated region
    $region14: #{_resized_crop_with_bboxes.1} parent=1 // pred_check
      _
    $region15: #{_resized_crop_with_bboxes.1} parent=1 // pred_check_branch
      %234 = sbr.rel (0) target = $region17
    $region16: #{_resized_crop_with_bboxes.1} parent=1 // pred_region
      %s236 = ssub.s32 384, 384
      %237 = vsyncadd [#allocation3], %s236
      %s238 = sshll.u32 [#allocation2], 4
      %s239 = int_to_ptr.vmem [resolvable:$true] %s238
      %244 = dma.vmem_to_hbm [thread:$0]  %s239, 384, %s3, [#allocation3], 128, 128, 8
    $region17: #{_resized_crop_with_bboxes.1} parent=1 // pred_fallthru
      _
    // Predicated region
    $region18: #{_resized_crop_with_bboxes.1} parent=1 // pred_check
      _
    $region19: #{_resized_crop_with_bboxes.1} parent=1 // pred_check_branch
      %246 = sbr.rel (0) target = $region21
    $region20: #{_resized_crop_with_bboxes.1} parent=1 // pred_region
      %247 = dma.done [#allocation3], 384
    $region21: #{_resized_crop_with_bboxes.1} parent=1 // pred_fallthru
      _
    %248 = vsyncpa [#allocation3], 1

</llo_original>
